<compile_context>
chip_gen: v6e
topology: v6e:2x2x1
jax: 0.10.0
libtpu: 0.0.40
codegen_flags: <defaults>
</compile_context>

<pallas_src>
import functools

import jax
import jax.numpy as jnp
import numpy as np
from jax.experimental import pallas as pl
from jax.experimental.pallas import tpu as pltpu

SMALL_ADDON_FOR_BCE = 1e-6


def _rpn3d_loss_kernel(prob_ref, pos_ref, neg_ref,      # VMEM (bb, 2, HW)
                       delta_ref, tgt_ref,              # VMEM (bb, 14, HW)
                       out_ref,                         # SMEM (B, 5)
                       *, sigma, bb):
    """Raw (un-normalized) per-batch-element loss sums and mask counts.

    out_ref[b, 0] = sum_b( -pos * log(prob + eps) )
    out_ref[b, 1] = sum_b( -neg * log(1 - prob + eps) )
    out_ref[b, 2] = sum_b( smooth_l1((delta - targets) * pos_mask) )
    out_ref[b, 3] = sum_b( pos )        # normalizer count (pre-clip)
    out_ref[b, 4] = sum_b( neg )        # normalizer count (pre-clip)
    """
    g = pl.program_id(0)
    sigma2 = sigma * sigma
    inv_sigma2 = 1.0 / sigma2
    half_sigma2 = 0.5 * sigma2
    half_inv_sigma2 = 0.5 / sigma2

    for i in range(bb):                      # static, unrolled at trace time
        b = g * bb + i

        prob = prob_ref[i]                   # (2, HW)  lane-dense
        pos = pos_ref[i]
        neg = neg_ref[i]

        cls_pos = -pos * jnp.log(prob + SMALL_ADDON_FOR_BCE)
        cls_neg = -neg * jnp.log(1.0 - prob + SMALL_ADDON_FOR_BCE)
        out_ref[b, 0] = jnp.sum(cls_pos)
        out_ref[b, 1] = jnp.sum(cls_neg)

        # Regression path: the 2-channel pos mask is broadcast in-kernel over
        # the 7 regression channels per anchor (no 14-channel mask input);
        # mask is 0/1 so (d - t) * m == d*m - t*m (matches torch exactly).
        diff_all = delta_ref[i] - tgt_ref[i]       # (14, HW)
        reg_total = 0.0
        for a in range(2):                          # two anchors, static
            diff = diff_all[7 * a:7 * (a + 1), :] * pos[a:a + 1, :]
            absd = jnp.abs(diff)
            sl1 = jnp.where(absd < inv_sigma2,
                            diff * diff * half_sigma2,
                            absd - half_inv_sigma2)
            reg_total = reg_total + jnp.sum(sl1)
        out_ref[b, 2] = reg_total

        # Normalizer counts: masks are already resident in VMEM, so summing
        # them here avoids a second HBM pass in the wrapper.
        out_ref[b, 3] = jnp.sum(pos)
        out_ref[b, 4] = jnp.sum(neg)


def rpn3d_forward_loss(prob_output, delta_output,
                       pos_equal_one, neg_equal_one, targets,
                       alpha=1.5, beta=1.0, sigma=3.0):
    """Mirrors RPN3D.forward loss computation.

    prob_output:  (B, 2, H, W)  float32, NCHW (already through sigmoid)
    delta_output: (B, 14, H, W) float32, NCHW
    pos_equal_one, neg_equal_one: (B, H, W, 2) float32, NHWC
    targets: (B, H, W, 14) float32, NHWC
    """
    B, A, H, W = prob_output.shape      # A == 2 anchors per cell
    C_REG = 7 * A                       # 14 regression channels
    HW = H * W

    # Lane-dense channel-major flattening: (B, C, H*W).  prob/delta are
    # already NCHW (free reshape); only the NHWC mask/target tensors get one
    # transpose each.  No pos_equal_one_for_reg materialization.
    prob_f = prob_output.reshape(B, A, HW).astype(jnp.float32)
    delta_f = delta_output.reshape(B, C_REG, HW).astype(jnp.float32)
    pos_f = jnp.transpose(pos_equal_one, (0, 3, 1, 2)).reshape(
        B, A, HW).astype(jnp.float32)
    neg_f = jnp.transpose(neg_equal_one, (0, 3, 1, 2)).reshape(
        B, A, HW).astype(jnp.float32)
    tgt_f = jnp.transpose(targets, (0, 3, 1, 2)).reshape(
        B, C_REG, HW).astype(jnp.float32)

    # Small problem (like the toy shapes here): one grid step over the whole
    # batch.  Large problems: one batch element per grid step.
    per_batch_bytes = 4 * HW * (3 * A + 2 * C_REG)
    bb = B if B * per_batch_bytes <= (8 << 20) else 1
    grid = (B // bb,)

    blk_cls = pl.BlockSpec((bb, A, HW), lambda g: (g, 0, 0))
    blk_reg = pl.BlockSpec((bb, C_REG, HW), lambda g: (g, 0, 0))

    partials = pl.pallas_call(
        functools.partial(_rpn3d_loss_kernel, sigma=float(sigma), bb=bb),
        grid=grid,
        in_specs=[blk_cls, blk_cls, blk_cls, blk_reg, blk_reg],
        out_specs=pl.BlockSpec(memory_space=pltpu.SMEM),
        out_shape=jax.ShapeDtypeStruct((B, 5), jnp.float32),
        compiler_params=pltpu.CompilerParams(
            dimension_semantics=("arbitrary",)),
    )(prob_f, pos_f, neg_f, delta_f, tgt_f)

    # Epilogue: per-batch normalization + global reductions (5*B scalar ops).
    pos_sum = jnp.maximum(partials[:, 3], 1.0)   # clip(a_min=1)
    neg_sum = jnp.maximum(partials[:, 4], 1.0)
    cls_pos_loss_rec = jnp.sum(partials[:, 0] / pos_sum)
    cls_neg_loss_rec = jnp.sum(partials[:, 1] / neg_sum)
    reg_loss = jnp.sum(partials[:, 2] / pos_sum)
    cls_loss = alpha * cls_pos_loss_rec + beta * cls_neg_loss_rec
    loss = cls_loss + reg_loss
    return (prob_output, delta_output, loss, cls_loss, reg_loss,
            cls_pos_loss_rec, cls_neg_loss_rec)


def _reference_loss(prob, delta, pos, neg, tgt, alpha=1.5, beta=1.0, sigma=3.0):
    """Pure-jnp mirror of the PyTorch forward (for correctness check)."""
    sigma2 = sigma * sigma
    pos_reg = jnp.concatenate([jnp.tile(pos[..., 0:1], (1, 1, 1, 7)),
                               jnp.tile(pos[..., 1:2], (1, 1, 1, 7))], axis=-1)
    pos_sum = jnp.maximum(jnp.sum(pos, axis=(1, 2, 3)), 1.0).reshape(-1, 1, 1, 1)
    neg_sum = jnp.maximum(jnp.sum(neg, axis=(1, 2, 3)), 1.0).reshape(-1, 1, 1, 1)
    pos_n = jnp.transpose(pos, (0, 3, 1, 2))
    neg_n = jnp.transpose(neg, (0, 3, 1, 2))
    tgt_n = jnp.transpose(tgt, (0, 3, 1, 2))
    pos_reg_n = jnp.transpose(pos_reg, (0, 3, 1, 2))
    cls_pos = -pos_n * jnp.log(prob + SMALL_ADDON_FOR_BCE) / pos_sum
    cls_neg = -neg_n * jnp.log(1.0 - prob + SMALL_ADDON_FOR_BCE) / neg_sum
    cls_loss = jnp.sum(alpha * cls_pos + beta * cls_neg)
    d = delta * pos_reg_n
    t = tgt_n * pos_reg_n
    diff = d - t
    absd = jnp.abs(diff)
    signs = (absd < 1.0 / sigma2).astype(jnp.float32)
    sl1 = (diff * diff * 0.5 * sigma2) * signs + (absd - 0.5 / sigma2) * (1 - signs)
    reg_loss = jnp.sum(sl1 / pos_sum)
    return (cls_loss + reg_loss, cls_loss, reg_loss,
            jnp.sum(cls_pos), jnp.sum(cls_neg))


if __name__ == "__main__":
    B, A, H, W = 2, 2, 16, 16
    key = jax.random.PRNGKey(0)
    k1, k2, k3, k4, k5 = jax.random.split(key, 5)

    # Synthetic RPN head outputs (would come from FeatureNet + MiddleAndRPN).
    prob_output = jax.nn.sigmoid(
        jax.random.normal(k1, (B, A, H, W), dtype=jnp.float32))
    delta_output = jax.random.normal(k2, (B, 7 * A, H, W), dtype=jnp.float32)

    # Synthetic anchor targets (would come from cal_rpn_target), NHWC like numpy.
    pos_equal_one = (jax.random.uniform(k3, (B, H, W, A)) > 0.9).astype(jnp.float32)
    neg_equal_one = ((jax.random.uniform(k4, (B, H, W, A)) > 0.5).astype(jnp.float32)
                     * (1.0 - pos_equal_one))
    targets = jax.random.normal(k5, (B, H, W, 7 * A), dtype=jnp.float32) * 0.1

    outs = rpn3d_forward_loss(prob_output, delta_output,
                              pos_equal_one, neg_equal_one, targets,
                              alpha=1.5, beta=1.0, sigma=3.0)
    outs = jax.block_until_ready(outs)
    (_, _, loss, cls_loss, reg_loss, cls_pos_rec, cls_neg_rec) = outs

    ref_loss, ref_cls, ref_reg, ref_pos, ref_neg = _reference_loss(
        prob_output, delta_output, pos_equal_one, neg_equal_one, targets)

    np.testing.assert_allclose(np.asarray(loss), np.asarray(ref_loss),
                               rtol=1e-4, atol=1e-4)
    np.testing.assert_allclose(np.asarray(cls_loss), np.asarray(ref_cls),
                               rtol=1e-4, atol=1e-4)
    np.testing.assert_allclose(np.asarray(reg_loss), np.asarray(ref_reg),
                               rtol=1e-4, atol=1e-4)
    np.testing.assert_allclose(np.asarray(cls_pos_rec), np.asarray(ref_pos),
                               rtol=1e-4, atol=1e-4)
    np.testing.assert_allclose(np.asarray(cls_neg_rec), np.asarray(ref_neg),
                               rtol=1e-4, atol=1e-4)

    print("KERNEL_OK")
</pallas_src>

<mosaic_0001>
module attributes {stable_mosaic.version = 11 : i64} {
  func.func @_rpn3d_loss_kernel(%arg0: i32, %arg1: memref<2x2x256xf32, #tpu.memory_space<vmem>>, %arg2: memref<2x2x256xf32, #tpu.memory_space<vmem>>, %arg3: memref<2x2x256xf32, #tpu.memory_space<vmem>>, %arg4: memref<2x14x256xf32, #tpu.memory_space<vmem>>, %arg5: memref<2x14x256xf32, #tpu.memory_space<vmem>>, %arg6: memref<2x5xf32, #tpu.memory_space<smem>>) attributes {dimension_semantics = [#tpu.dimension_semantics<arbitrary>], iteration_bounds = array<i64: 1>, scalar_prefetch = 0 : i64, scratch_operands = 0 : i64, tpu.core_type = #tpu.core_type<tc>, window_params = [{transform_indices = @transform_0, window_bounds = array<i64: 2, 2, 256>}, {transform_indices = @transform_1, window_bounds = array<i64: 2, 2, 256>}, {transform_indices = @transform_2, window_bounds = array<i64: 2, 2, 256>}, {transform_indices = @transform_3, window_bounds = array<i64: 2, 14, 256>}, {transform_indices = @transform_4, window_bounds = array<i64: 2, 14, 256>}, {transform_indices = @transform_5, window_bounds = array<i64: 2, 5>}]} {
    %c2_i32 = arith.constant 2 : i32
    %0 = arith.muli %arg0, %c2_i32 : i32
    %c0_i32 = arith.constant 0 : i32
    %1 = arith.addi %0, %c0_i32 : i32
    %c0 = arith.constant 0 : index
    %c0_0 = arith.constant 0 : index
    %c0_1 = arith.constant 0 : index
    %2 = vector.load %arg1[%c0, %c0_0, %c0_1] : memref<2x2x256xf32, #tpu.memory_space<vmem>>, vector<1x2x256xf32>
    %3 = vector.shape_cast %2 : vector<1x2x256xf32> to vector<2x256xf32>
    %c0_2 = arith.constant 0 : index
    %c0_3 = arith.constant 0 : index
    %c0_4 = arith.constant 0 : index
    %4 = vector.load %arg2[%c0_2, %c0_3, %c0_4] : memref<2x2x256xf32, #tpu.memory_space<vmem>>, vector<1x2x256xf32>
    %5 = vector.shape_cast %4 : vector<1x2x256xf32> to vector<2x256xf32>
    %c0_5 = arith.constant 0 : index
    %c0_6 = arith.constant 0 : index
    %c0_7 = arith.constant 0 : index
    %6 = vector.load %arg3[%c0_5, %c0_6, %c0_7] : memref<2x2x256xf32, #tpu.memory_space<vmem>>, vector<1x2x256xf32>
    %7 = vector.shape_cast %6 : vector<1x2x256xf32> to vector<2x256xf32>
    %cst = arith.constant 0.000000e+00 : f32
    %8 = vector.broadcast %cst : f32 to vector<2x256xf32>
    %9 = arith.subf %8, %5 : vector<2x256xf32>
    %cst_8 = arith.constant 9.99999997E-7 : f32
    %10 = vector.broadcast %cst_8 : f32 to vector<2x256xf32>
    %11 = arith.addf %3, %10 : vector<2x256xf32>
    %12 = math.log %11 : vector<2x256xf32>
    %13 = arith.mulf %9, %12 : vector<2x256xf32>
    %cst_9 = arith.constant 0.000000e+00 : f32
    %14 = vector.broadcast %cst_9 : f32 to vector<2x256xf32>
    %15 = arith.subf %14, %7 : vector<2x256xf32>
    %cst_10 = arith.constant 1.000000e+00 : f32
    %16 = vector.broadcast %cst_10 : f32 to vector<2x256xf32>
    %17 = arith.subf %16, %3 : vector<2x256xf32>
    %cst_11 = arith.constant 9.99999997E-7 : f32
    %18 = vector.broadcast %cst_11 : f32 to vector<2x256xf32>
    %19 = arith.addf %17, %18 : vector<2x256xf32>
    %20 = math.log %19 : vector<2x256xf32>
    %21 = arith.mulf %15, %20 : vector<2x256xf32>
    %22 = vector.shape_cast %13 : vector<2x256xf32> to vector<1x2x256xf32>
    %cst_12 = arith.constant dense<0.000000e+00> : vector<1xf32>
    %23 = vector.multi_reduction <add>, %22, %cst_12 [1, 2] : vector<1x2x256xf32> to vector<1xf32>
    %24 = vector.shape_cast %23 : vector<1xf32> to vector<1x1x1xf32>
    %25 = vector.extract %24[0, 0, 0] : f32 from vector<1x1x1xf32>
    %26 = arith.index_cast %1 : i32 to index
    %c0_13 = arith.constant 0 : index
    %27 = memref.load %arg6[%26, %c0_13] : memref<2x5xf32, #tpu.memory_space<smem>>
    memref.store %25, %arg6[%26, %c0_13] : memref<2x5xf32, #tpu.memory_space<smem>>
    %28 = vector.shape_cast %21 : vector<2x256xf32> to vector<1x2x256xf32>
    %cst_14 = arith.constant dense<0.000000e+00> : vector<1xf32>
    %29 = vector.multi_reduction <add>, %28, %cst_14 [1, 2] : vector<1x2x256xf32> to vector<1xf32>
    %30 = vector.shape_cast %29 : vector<1xf32> to vector<1x1x1xf32>
    %31 = vector.extract %30[0, 0, 0] : f32 from vector<1x1x1xf32>
    %32 = arith.index_cast %1 : i32 to index
    %c1 = arith.constant 1 : index
    %33 = memref.load %arg6[%32, %c1] : memref<2x5xf32, #tpu.memory_space<smem>>
    memref.store %31, %arg6[%32, %c1] : memref<2x5xf32, #tpu.memory_space<smem>>
    %c0_15 = arith.constant 0 : index
    %c0_16 = arith.constant 0 : index
    %c0_17 = arith.constant 0 : index
    %34 = vector.load %arg4[%c0_15, %c0_16, %c0_17] : memref<2x14x256xf32, #tpu.memory_space<vmem>>, vector<1x14x256xf32>
    %35 = vector.shape_cast %34 : vector<1x14x256xf32> to vector<14x256xf32>
    %c0_18 = arith.constant 0 : index
    %c0_19 = arith.constant 0 : index
    %c0_20 = arith.constant 0 : index
    %36 = vector.load %arg5[%c0_18, %c0_19, %c0_20] : memref<2x14x256xf32, #tpu.memory_space<vmem>>, vector<1x14x256xf32>
    %37 = vector.shape_cast %36 : vector<1x14x256xf32> to vector<14x256xf32>
    %38 = arith.subf %35, %37 : vector<14x256xf32>
    %39 = vector.extract_strided_slice %38 {offsets = [0, 0], sizes = [7, 256], strides = [1, 1]} : vector<14x256xf32> to vector<7x256xf32>
    %40 = vector.extract_strided_slice %5 {offsets = [0, 0], sizes = [1, 256], strides = [1, 1]} : vector<2x256xf32> to vector<1x256xf32>
    %41 = vector.broadcast %40 : vector<1x256xf32> to vector<7x256xf32>
    %42 = arith.mulf %39, %41 : vector<7x256xf32>
    %43 = math.absf %42 : vector<7x256xf32>
    %cst_21 = arith.constant 0.111111112 : f32
    %44 = vector.broadcast %cst_21 : f32 to vector<7x256xf32>
    %45 = arith.cmpf olt, %43, %44 : vector<7x256xf32>
    %46 = arith.mulf %42, %42 : vector<7x256xf32>
    %cst_22 = arith.constant 4.500000e+00 : f32
    %47 = vector.broadcast %cst_22 : f32 to vector<7x256xf32>
    %48 = arith.mulf %46, %47 : vector<7x256xf32>
    %cst_23 = arith.constant 0.055555556 : f32
    %49 = vector.broadcast %cst_23 : f32 to vector<7x256xf32>
    %50 = arith.subf %43, %49 : vector<7x256xf32>
    %51 = arith.select %45, %48, %50 : vector<7x256xi1>, vector<7x256xf32>
    %52 = vector.shape_cast %51 : vector<7x256xf32> to vector<1x7x256xf32>
    %cst_24 = arith.constant dense<0.000000e+00> : vector<1xf32>
    %53 = vector.multi_reduction <add>, %52, %cst_24 [1, 2] : vector<1x7x256xf32> to vector<1xf32>
    %54 = vector.shape_cast %53 : vector<1xf32> to vector<1x1x1xf32>
    %55 = vector.extract %54[0, 0, 0] : f32 from vector<1x1x1xf32>
    %cst_25 = arith.constant 0.000000e+00 : f32
    %56 = arith.addf %cst_25, %55 : f32
    %57 = vector.extract_strided_slice %38 {offsets = [7, 0], sizes = [7, 256], strides = [1, 1]} : vector<14x256xf32> to vector<7x256xf32>
    %58 = vector.extract_strided_slice %5 {offsets = [1, 0], sizes = [1, 256], strides = [1, 1]} : vector<2x256xf32> to vector<1x256xf32>
    %59 = vector.broadcast %58 : vector<1x256xf32> to vector<7x256xf32>
    %60 = arith.mulf %57, %59 : vector<7x256xf32>
    %61 = math.absf %60 : vector<7x256xf32>
    %cst_26 = arith.constant 0.111111112 : f32
    %62 = vector.broadcast %cst_26 : f32 to vector<7x256xf32>
    %63 = arith.cmpf olt, %61, %62 : vector<7x256xf32>
    %64 = arith.mulf %60, %60 : vector<7x256xf32>
    %cst_27 = arith.constant 4.500000e+00 : f32
    %65 = vector.broadcast %cst_27 : f32 to vector<7x256xf32>
    %66 = arith.mulf %64, %65 : vector<7x256xf32>
    %cst_28 = arith.constant 0.055555556 : f32
    %67 = vector.broadcast %cst_28 : f32 to vector<7x256xf32>
    %68 = arith.subf %61, %67 : vector<7x256xf32>
    %69 = arith.select %63, %66, %68 : vector<7x256xi1>, vector<7x256xf32>
    %70 = vector.shape_cast %69 : vector<7x256xf32> to vector<1x7x256xf32>
    %cst_29 = arith.constant dense<0.000000e+00> : vector<1xf32>
    %71 = vector.multi_reduction <add>, %70, %cst_29 [1, 2] : vector<1x7x256xf32> to vector<1xf32>
    %72 = vector.shape_cast %71 : vector<1xf32> to vector<1x1x1xf32>
    %73 = vector.extract %72[0, 0, 0] : f32 from vector<1x1x1xf32>
    %74 = arith.addf %56, %73 : f32
    %75 = arith.index_cast %1 : i32 to index
    %c2 = arith.constant 2 : index
    %76 = memref.load %arg6[%75, %c2] : memref<2x5xf32, #tpu.memory_space<smem>>
    memref.store %74, %arg6[%75, %c2] : memref<2x5xf32, #tpu.memory_space<smem>>
    %77 = vector.shape_cast %5 : vector<2x256xf32> to vector<1x2x256xf32>
    %cst_30 = arith.constant dense<0.000000e+00> : vector<1xf32>
    %78 = vector.multi_reduction <add>, %77, %cst_30 [1, 2] : vector<1x2x256xf32> to vector<1xf32>
    %79 = vector.shape_cast %78 : vector<1xf32> to vector<1x1x1xf32>
    %80 = vector.extract %79[0, 0, 0] : f32 from vector<1x1x1xf32>
    %81 = arith.index_cast %1 : i32 to index
    %c3 = arith.constant 3 : index
    %82 = memref.load %arg6[%81, %c3] : memref<2x5xf32, #tpu.memory_space<smem>>
    memref.store %80, %arg6[%81, %c3] : memref<2x5xf32, #tpu.memory_space<smem>>
    %83 = vector.shape_cast %7 : vector<2x256xf32> to vector<1x2x256xf32>
    %cst_31 = arith.constant dense<0.000000e+00> : vector<1xf32>
    %84 = vector.multi_reduction <add>, %83, %cst_31 [1, 2] : vector<1x2x256xf32> to vector<1xf32>
    %85 = vector.shape_cast %84 : vector<1xf32> to vector<1x1x1xf32>
    %86 = vector.extract %85[0, 0, 0] : f32 from vector<1x1x1xf32>
    %87 = arith.index_cast %1 : i32 to index
    %c4 = arith.constant 4 : index
    %88 = memref.load %arg6[%87, %c4] : memref<2x5xf32, #tpu.memory_space<smem>>
    memref.store %86, %arg6[%87, %c4] : memref<2x5xf32, #tpu.memory_space<smem>>
    %c2_i32_32 = arith.constant 2 : i32
    %89 = arith.muli %arg0, %c2_i32_32 : i32
    %c1_i32 = arith.constant 1 : i32
    %90 = arith.addi %89, %c1_i32 : i32
    %c1_33 = arith.constant 1 : index
    %c0_34 = arith.constant 0 : index
    %c0_35 = arith.constant 0 : index
    %91 = vector.load %arg1[%c1_33, %c0_34, %c0_35] : memref<2x2x256xf32, #tpu.memory_space<vmem>>, vector<1x2x256xf32>
    %92 = vector.shape_cast %91 : vector<1x2x256xf32> to vector<2x256xf32>
    %c1_36 = arith.constant 1 : index
    %c0_37 = arith.constant 0 : index
    %c0_38 = arith.constant 0 : index
    %93 = vector.load %arg2[%c1_36, %c0_37, %c0_38] : memref<2x2x256xf32, #tpu.memory_space<vmem>>, vector<1x2x256xf32>
    %94 = vector.shape_cast %93 : vector<1x2x256xf32> to vector<2x256xf32>
    %c1_39 = arith.constant 1 : index
    %c0_40 = arith.constant 0 : index
    %c0_41 = arith.constant 0 : index
    %95 = vector.load %arg3[%c1_39, %c0_40, %c0_41] : memref<2x2x256xf32, #tpu.memory_space<vmem>>, vector<1x2x256xf32>
    %96 = vector.shape_cast %95 : vector<1x2x256xf32> to vector<2x256xf32>
    %cst_42 = arith.constant 0.000000e+00 : f32
    %97 = vector.broadcast %cst_42 : f32 to vector<2x256xf32>
    %98 = arith.subf %97, %94 : vector<2x256xf32>
    %cst_43 = arith.constant 9.99999997E-7 : f32
    %99 = vector.broadcast %cst_43 : f32 to vector<2x256xf32>
    %100 = arith.addf %92, %99 : vector<2x256xf32>
    %101 = math.log %100 : vector<2x256xf32>
    %102 = arith.mulf %98, %101 : vector<2x256xf32>
    %cst_44 = arith.constant 0.000000e+00 : f32
    %103 = vector.broadcast %cst_44 : f32 to vector<2x256xf32>
    %104 = arith.subf %103, %96 : vector<2x256xf32>
    %cst_45 = arith.constant 1.000000e+00 : f32
    %105 = vector.broadcast %cst_45 : f32 to vector<2x256xf32>
    %106 = arith.subf %105, %92 : vector<2x256xf32>
    %cst_46 = arith.constant 9.99999997E-7 : f32
    %107 = vector.broadcast %cst_46 : f32 to vector<2x256xf32>
    %108 = arith.addf %106, %107 : vector<2x256xf32>
    %109 = math.log %108 : vector<2x256xf32>
    %110 = arith.mulf %104, %109 : vector<2x256xf32>
    %111 = vector.shape_cast %102 : vector<2x256xf32> to vector<1x2x256xf32>
    %cst_47 = arith.constant dense<0.000000e+00> : vector<1xf32>
    %112 = vector.multi_reduction <add>, %111, %cst_47 [1, 2] : vector<1x2x256xf32> to vector<1xf32>
    %113 = vector.shape_cast %112 : vector<1xf32> to vector<1x1x1xf32>
    %114 = vector.extract %113[0, 0, 0] : f32 from vector<1x1x1xf32>
    %115 = arith.index_cast %90 : i32 to index
    %c0_48 = arith.constant 0 : index
    %116 = memref.load %arg6[%115, %c0_48] : memref<2x5xf32, #tpu.memory_space<smem>>
    memref.store %114, %arg6[%115, %c0_48] : memref<2x5xf32, #tpu.memory_space<smem>>
    %117 = vector.shape_cast %110 : vector<2x256xf32> to vector<1x2x256xf32>
    %cst_49 = arith.constant dense<0.000000e+00> : vector<1xf32>
    %118 = vector.multi_reduction <add>, %117, %cst_49 [1, 2] : vector<1x2x256xf32> to vector<1xf32>
    %119 = vector.shape_cast %118 : vector<1xf32> to vector<1x1x1xf32>
    %120 = vector.extract %119[0, 0, 0] : f32 from vector<1x1x1xf32>
    %121 = arith.index_cast %90 : i32 to index
    %c1_50 = arith.constant 1 : index
    %122 = memref.load %arg6[%121, %c1_50] : memref<2x5xf32, #tpu.memory_space<smem>>
    memref.store %120, %arg6[%121, %c1_50] : memref<2x5xf32, #tpu.memory_space<smem>>
    %c1_51 = arith.constant 1 : index
    %c0_52 = arith.constant 0 : index
    %c0_53 = arith.constant 0 : index
    %123 = vector.load %arg4[%c1_51, %c0_52, %c0_53] : memref<2x14x256xf32, #tpu.memory_space<vmem>>, vector<1x14x256xf32>
    %124 = vector.shape_cast %123 : vector<1x14x256xf32> to vector<14x256xf32>
    %c1_54 = arith.constant 1 : index
    %c0_55 = arith.constant 0 : index
    %c0_56 = arith.constant 0 : index
    %125 = vector.load %arg5[%c1_54, %c0_55, %c0_56] : memref<2x14x256xf32, #tpu.memory_space<vmem>>, vector<1x14x256xf32>
    %126 = vector.shape_cast %125 : vector<1x14x256xf32> to vector<14x256xf32>
    %127 = arith.subf %124, %126 : vector<14x256xf32>
    %128 = vector.extract_strided_slice %127 {offsets = [0, 0], sizes = [7, 256], strides = [1, 1]} : vector<14x256xf32> to vector<7x256xf32>
    %129 = vector.extract_strided_slice %94 {offsets = [0, 0], sizes = [1, 256], strides = [1, 1]} : vector<2x256xf32> to vector<1x256xf32>
    %130 = vector.broadcast %129 : vector<1x256xf32> to vector<7x256xf32>
    %131 = arith.mulf %128, %130 : vector<7x256xf32>
    %132 = math.absf %131 : vector<7x256xf32>
    %cst_57 = arith.constant 0.111111112 : f32
    %133 = vector.broadcast %cst_57 : f32 to vector<7x256xf32>
    %134 = arith.cmpf olt, %132, %133 : vector<7x256xf32>
    %135 = arith.mulf %131, %131 : vector<7x256xf32>
    %cst_58 = arith.constant 4.500000e+00 : f32
    %136 = vector.broadcast %cst_58 : f32 to vector<7x256xf32>
    %137 = arith.mulf %135, %136 : vector<7x256xf32>
    %cst_59 = arith.constant 0.055555556 : f32
    %138 = vector.broadcast %cst_59 : f32 to vector<7x256xf32>
    %139 = arith.subf %132, %138 : vector<7x256xf32>
    %140 = arith.select %134, %137, %139 : vector<7x256xi1>, vector<7x256xf32>
    %141 = vector.shape_cast %140 : vector<7x256xf32> to vector<1x7x256xf32>
    %cst_60 = arith.constant dense<0.000000e+00> : vector<1xf32>
    %142 = vector.multi_reduction <add>, %141, %cst_60 [1, 2] : vector<1x7x256xf32> to vector<1xf32>
    %143 = vector.shape_cast %142 : vector<1xf32> to vector<1x1x1xf32>
    %144 = vector.extract %143[0, 0, 0] : f32 from vector<1x1x1xf32>
    %cst_61 = arith.constant 0.000000e+00 : f32
    %145 = arith.addf %cst_61, %144 : f32
    %146 = vector.extract_strided_slice %127 {offsets = [7, 0], sizes = [7, 256], strides = [1, 1]} : vector<14x256xf32> to vector<7x256xf32>
    %147 = vector.extract_strided_slice %94 {offsets = [1, 0], sizes = [1, 256], strides = [1, 1]} : vector<2x256xf32> to vector<1x256xf32>
    %148 = vector.broadcast %147 : vector<1x256xf32> to vector<7x256xf32>
    %149 = arith.mulf %146, %148 : vector<7x256xf32>
    %150 = math.absf %149 : vector<7x256xf32>
    %cst_62 = arith.constant 0.111111112 : f32
    %151 = vector.broadcast %cst_62 : f32 to vector<7x256xf32>
    %152 = arith.cmpf olt, %150, %151 : vector<7x256xf32>
    %153 = arith.mulf %149, %149 : vector<7x256xf32>
    %cst_63 = arith.constant 4.500000e+00 : f32
    %154 = vector.broadcast %cst_63 : f32 to vector<7x256xf32>
    %155 = arith.mulf %153, %154 : vector<7x256xf32>
    %cst_64 = arith.constant 0.055555556 : f32
    %156 = vector.broadcast %cst_64 : f32 to vector<7x256xf32>
    %157 = arith.subf %150, %156 : vector<7x256xf32>
    %158 = arith.select %152, %155, %157 : vector<7x256xi1>, vector<7x256xf32>
    %159 = vector.shape_cast %158 : vector<7x256xf32> to vector<1x7x256xf32>
    %cst_65 = arith.constant dense<0.000000e+00> : vector<1xf32>
    %160 = vector.multi_reduction <add>, %159, %cst_65 [1, 2] : vector<1x7x256xf32> to vector<1xf32>
    %161 = vector.shape_cast %160 : vector<1xf32> to vector<1x1x1xf32>
    %162 = vector.extract %161[0, 0, 0] : f32 from vector<1x1x1xf32>
    %163 = arith.addf %145, %162 : f32
    %164 = arith.index_cast %90 : i32 to index
    %c2_66 = arith.constant 2 : index
    %165 = memref.load %arg6[%164, %c2_66] : memref<2x5xf32, #tpu.memory_space<smem>>
    memref.store %163, %arg6[%164, %c2_66] : memref<2x5xf32, #tpu.memory_space<smem>>
    %166 = vector.shape_cast %94 : vector<2x256xf32> to vector<1x2x256xf32>
    %cst_67 = arith.constant dense<0.000000e+00> : vector<1xf32>
    %167 = vector.multi_reduction <add>, %166, %cst_67 [1, 2] : vector<1x2x256xf32> to vector<1xf32>
    %168 = vector.shape_cast %167 : vector<1xf32> to vector<1x1x1xf32>
    %169 = vector.extract %168[0, 0, 0] : f32 from vector<1x1x1xf32>
    %170 = arith.index_cast %90 : i32 to index
    %c3_68 = arith.constant 3 : index
    %171 = memref.load %arg6[%170, %c3_68] : memref<2x5xf32, #tpu.memory_space<smem>>
    memref.store %169, %arg6[%170, %c3_68] : memref<2x5xf32, #tpu.memory_space<smem>>
    %172 = vector.shape_cast %96 : vector<2x256xf32> to vector<1x2x256xf32>
    %cst_69 = arith.constant dense<0.000000e+00> : vector<1xf32>
    %173 = vector.multi_reduction <add>, %172, %cst_69 [1, 2] : vector<1x2x256xf32> to vector<1xf32>
    %174 = vector.shape_cast %173 : vector<1xf32> to vector<1x1x1xf32>
    %175 = vector.extract %174[0, 0, 0] : f32 from vector<1x1x1xf32>
    %176 = arith.index_cast %90 : i32 to index
    %c4_70 = arith.constant 4 : index
    %177 = memref.load %arg6[%176, %c4_70] : memref<2x5xf32, #tpu.memory_space<smem>>
    memref.store %175, %arg6[%176, %c4_70] : memref<2x5xf32, #tpu.memory_space<smem>>
    return
  }
  func.func @transform_0(%arg0: i32) -> (i32, i32, i32) {
    %c0_i32 = arith.constant 0 : i32
    %c0_i32_0 = arith.constant 0 : i32
    %c0_i32_1 = arith.constant 0 : i32
    return %arg0, %c0_i32, %c0_i32_0 : i32, i32, i32
  }
  func.func @transform_1(%arg0: i32) -> (i32, i32, i32) {
    %c0_i32 = arith.constant 0 : i32
    %c0_i32_0 = arith.constant 0 : i32
    %c0_i32_1 = arith.constant 0 : i32
    return %arg0, %c0_i32, %c0_i32_0 : i32, i32, i32
  }
  func.func @transform_2(%arg0: i32) -> (i32, i32, i32) {
    %c0_i32 = arith.constant 0 : i32
    %c0_i32_0 = arith.constant 0 : i32
    %c0_i32_1 = arith.constant 0 : i32
    return %arg0, %c0_i32, %c0_i32_0 : i32, i32, i32
  }
  func.func @transform_3(%arg0: i32) -> (i32, i32, i32) {
    %c0_i32 = arith.constant 0 : i32
    %c0_i32_0 = arith.constant 0 : i32
    %c0_i32_1 = arith.constant 0 : i32
    return %arg0, %c0_i32, %c0_i32_0 : i32, i32, i32
  }
  func.func @transform_4(%arg0: i32) -> (i32, i32, i32) {
    %c0_i32 = arith.constant 0 : i32
    %c0_i32_0 = arith.constant 0 : i32
    %c0_i32_1 = arith.constant 0 : i32
    return %arg0, %c0_i32, %c0_i32_0 : i32, i32, i32
  }
  func.func @transform_5(%arg0: i32) -> (i32, i32) {
    %c0_i32 = arith.constant 0 : i32
    %c0_i32_0 = arith.constant 0 : i32
    %c0_i32_1 = arith.constant 0 : i32
    return %c0_i32, %c0_i32_0 : i32, i32
  }
}

</mosaic_0001>

<llo_original>
// kernel: tpu_custom_call.1
$region0: #{tpu_custom_call.1}
  #allocation0 [shape = 'u32[]', space=smem, size = 0x4, offset = 0x4, fixed_abs, tag = 'smem constant byte address 0x4 - core index']
  #allocation1 [shape = 'u32[144,128]{1,0:T(1,128)}', space=vmem, size = 0x12000, scoped, tag = 'internal scratch']
  %s0 = inlined_call_operand.vmem [shape: f32[2,2,256], index: 0, kind: input, shape index: {}]
  %s1 = inlined_call_operand.vmem [shape: f32[2,2,256], index: 1, kind: input, shape index: {}]
  %s2 = inlined_call_operand.vmem [shape: f32[2,2,256], index: 2, kind: input, shape index: {}]
  %s3 = inlined_call_operand.vmem [shape: f32[2,14,256], index: 3, kind: input, shape index: {}]
  %s4 = inlined_call_operand.vmem [shape: f32[2,14,256], index: 4, kind: input, shape index: {}]
  %s5 = inlined_call_operand.hbm [shape: f32[2,5], index: 5, kind: output, shape index: {}]
  %s6 = sld [smem:[#allocation0]]
  $region30: #{tpu_custom_call.1} parent=0
    _
  %s8 = ssub.s32 1, %s6
  %s9 = scalar_select 0, %s8, %s6
  $region1: #{tpu_custom_call.1} parent=0
    #allocation2 [shape = 'u8[1024]{0}', space=smem, size = 0x400, scoped, tag = 'output window, operand 0, single buffered']
    #allocation3 [shape = 's32[1]{0}', space=sflag, size = 0x4, scoped, tag = 'scoped memory for tpu_custom_call.1']
    %10 = vsyncpa [#allocation3], 0
    // Predicated region
    $region2: #{tpu_custom_call.1} parent=1 // pred_check
      _
    $region3: #{tpu_custom_call.1} parent=1 // pred_check_branch
      %12 = sbr.rel (0) target = $region5
    $region4: #{tpu_custom_call.1} parent=1 // pred_region
      _
    $region5: #{tpu_custom_call.1} parent=1 // pred_fallthru
      _
    // Predicated region
    $region6: #{tpu_custom_call.1} parent=1 // pred_check
      _
    $region7: #{tpu_custom_call.1} parent=1 // pred_check_branch
      %14 = sbr.rel (0) target = $region9
    $region8: #{tpu_custom_call.1} parent=1 // pred_region
      _
    $region9: #{tpu_custom_call.1} parent=1 // pred_fallthru
      _
    // Predicated region
    $region10: #{tpu_custom_call.1} parent=1 // pred_check
      _
    $region11: #{tpu_custom_call.1} parent=1 // pred_check_branch
      %16 = sbr.rel (0) target = $region13
    $region12: #{tpu_custom_call.1} parent=1 // pred_region
      _
    $region13: #{tpu_custom_call.1} parent=1 // pred_fallthru
      _
    // Predicated region
    $region14: #{tpu_custom_call.1} parent=1 // pred_check
      _
    $region15: #{tpu_custom_call.1} parent=1 // pred_check_branch
      %18 = sbr.rel (0) target = $region17
    $region16: #{tpu_custom_call.1} parent=1 // pred_region
      _
    $region17: #{tpu_custom_call.1} parent=1 // pred_fallthru
      _
    // Predicated region
    $region18: #{tpu_custom_call.1} parent=1 // pred_check
      _
    $region19: #{tpu_custom_call.1} parent=1 // pred_check_branch
      %20 = sbr.rel (0) target = $region21
    $region20: #{tpu_custom_call.1} parent=1 // pred_region
      _
    $region21: #{tpu_custom_call.1} parent=1 // pred_fallthru
      _
    %s21 = smul.u32 0, 2
    %v22 = vld [vmem:[%s0] sm:$0xf]
    %v23 = vld [vmem:[%s1] sm:$0xf]
    %v24 = vld [vmem:[%s2] sm:$0xf]
    %v25 = vsub.f32 0.0, %v23
    %v26 = vadd.f32 %v22, 1e-06
    %v27 = vlog2.pop %v26
    %v28 = vmul.f32 %v27, 0.6931472
    %v29 = vmul.f32 %v25, %v28
    %v30 = vsub.f32 0.0, %v24
    %v31 = vsub.f32 1.0, %v22
    %v32 = vadd.f32 %v31, 1e-06
    %v33 = vlog2.pop %v32
    %v34 = vmul.f32 %v33, 0.6931472
    %v35 = vmul.f32 %v30, %v34
    %v38 = vunpack.c.l.s4 1983009808
    %v39 = vunpack.c.0.s8 %v38
    %v40 = vlaneseq
    %v41 = vshrl.u32 %v40, 7
    %v42 = vsub.s32 %v39, %v41
    %v43 = vrot.slane %v29, %v42
    %v44 = vcombine.high %v43, %v43
    %vm47 = vcmask 1041408
    %v48 = vsel %vm47, %v43, 0.0
    %v49 = vsel %vm47, %v44, 0.0
    %v50 = vadd.f32 %v48, %v49
    %51 = vadd.xlane.f32.xlu0 %v50
    %v52 = vpop.xlane.xlu0 %51
    %v53 = vrot.slane %v52, 4
    %v54 = vadd.f32 %v52, %v53
    %v55 = vrot.slane %v54, 2
    %v56 = vadd.f32 %v54, %v55
    %v57 = vrot.slane %v56, 1
    %v58 = vadd.f32 %v56, %v57
    %s59 = vtos %v58
    %s60 = smul.u32 %s21, 128
    %s61 = scalar_lea.smem [#allocation2], %s60
    %62 = sst [smem:[%s61]] %s59
    %v65 = vunpack.c.l.s4 1983009808
    %v66 = vunpack.c.0.s8 %v65
    %v67 = vlaneseq
    %v68 = vshrl.u32 %v67, 7
    %v69 = vsub.s32 %v66, %v68
    %v70 = vrot.slane %v35, %v69
    %v71 = vcombine.high %v70, %v70
    %v74 = vsel %vm47, %v70, 0.0
    %v75 = vsel %vm47, %v71, 0.0
    %v76 = vadd.f32 %v74, %v75
    %77 = vadd.xlane.f32.xlu0 %v76
    %v78 = vpop.xlane.xlu0 %77
    %v79 = vrot.slane %v78, 4
    %v80 = vadd.f32 %v78, %v79
    %v81 = vrot.slane %v80, 2
    %v82 = vadd.f32 %v80, %v81
    %v83 = vrot.slane %v82, 1
    %v84 = vadd.f32 %v82, %v83
    %s85 = vtos %v84
    %s86 = sadd.s32 %s60, 1
    %s87 = scalar_lea.smem [#allocation2], %s86
    %88 = sst [smem:[%s87]] %s85
    %v89 = vld [vmem:[%s3] sm:$0xff]
    %v90 = vld [vmem:[%s3 + $0x8] sm:$0xff]
    %v91 = vld [vmem:[%s3 + $0x10] sm:$0x3f]
    %v92 = vld [vmem:[%s3 + $0x18] sm:$0x3f]
    %v93 = vld [vmem:[%s4] sm:$0xff]
    %v94 = vld [vmem:[%s4 + $0x8] sm:$0xff]
    %v95 = vld [vmem:[%s4 + $0x10] sm:$0x3f]
    %v96 = vld [vmem:[%s4 + $0x18] sm:$0x3f]
    %v97 = vsub.f32 %v89, %v93
    %v98 = vsub.f32 %v90, %v94
    %v99 = vsub.f32 %v91, %v95
    %v100 = vsub.f32 %v92, %v96
    %v102 = vlaneseq
    %v103 = vshrl.u32 %v102, 7
    %v104 = vsub.s32 0, %v103
    %v105 = vrot.slane %v23, %v104
    %v106 = vlaneseq
    %v107 = vshrl.u32 %v106, 7
    %v108 = vsub.s32 2, %v107
    %v109 = vrot.slane %v23, %v108
    %v112 = vlaneseq
    %v113 = vshrl.u32 %v112, 7
    %v114 = vsub.s32 0, %v113
    %v115 = vrot.slane %v105, %v114
    %v116 = vlaneseq
    %v117 = vshrl.u32 %v116, 7
    %v118 = vsub.s32 0, %v117
    %v119 = vrot.slane %v109, %v118
    %v120 = vmul.f32 %v97, %v115
    %v121 = vmul.f32 %v98, %v119
    %v122 = vand.u32 2147483647, %v120
    %v123 = vand.u32 2147483647, %v121
    %vm124 = vcmp.lt.f32.partialorder %v122, 0.11111111
    %vm125 = vcmp.lt.f32.partialorder %v123, 0.11111111
    %v126 = vmul.f32 %v120, %v120
    %v127 = vmul.f32 %v121, %v121
    %v128 = vmul.f32 %v126, 4.5
    %v129 = vmul.f32 %v127, 4.5
    %v130 = vsub.f32 %v122, 0.055555556
    %v131 = vsub.f32 %v123, 0.055555556
    %v132 = vsel %vm124, %v128, %v130
    %v133 = vsel %vm125, %v129, %v131
    %vm134 = vcmask 1046528
    %v135 = vsel %vm134, %v132, 0.0
    %v136 = vsel %vm134, %v133, 0.0
    %v137 = vadd.f32 %v135, %v136
    %138 = vadd.xlane.f32.xlu0 %v137
    %v139 = vpop.xlane.xlu0 %138
    %v140 = vrot.slane %v139, 4
    %v141 = vadd.f32 %v139, %v140
    %v142 = vrot.slane %v141, 2
    %v143 = vadd.f32 %v141, %v142
    %v144 = vrot.slane %v143, 1
    %v145 = vadd.f32 %v143, %v144
    %s146 = vtos %v145
    %s147 = sadd.f32 %s146, 0.0
    %v148 = vlaneseq
    %v149 = vshrl.u32 %v148, 7
    %v150 = vsub.s32 1, %v149
    %v151 = vrot.slane %v23, %v150
    %v152 = vlaneseq
    %v153 = vshrl.u32 %v152, 7
    %v154 = vsub.s32 3, %v153
    %v155 = vrot.slane %v23, %v154
    %v158 = vlaneseq
    %v159 = vshrl.u32 %v158, 7
    %v160 = vsub.s32 1, %v159
    %v161 = vrot.slane %v151, %v160
    %v162 = vlaneseq
    %v163 = vshrl.u32 %v162, 7
    %v164 = vsub.s32 1, %v163
    %v165 = vrot.slane %v155, %v164
    %v166 = vmul.f32 %v97, %v161
    %v167 = vmul.f32 %v98, %v165
    %v168 = vmul.f32 %v99, %v161
    %v169 = vmul.f32 %v100, %v165
    %v170 = vand.u32 2147483647, %v166
    %v171 = vand.u32 2147483647, %v167
    %v172 = vand.u32 2147483647, %v168
    %v173 = vand.u32 2147483647, %v169
    %vm174 = vcmp.lt.f32.partialorder %v170, 0.11111111
    %vm175 = vcmp.lt.f32.partialorder %v171, 0.11111111
    %vm176 = vcmp.lt.f32.partialorder %v172, 0.11111111
    %vm177 = vcmp.lt.f32.partialorder %v173, 0.11111111
    %v178 = vmul.f32 %v166, %v166
    %v179 = vmul.f32 %v167, %v167
    %v180 = vmul.f32 %v168, %v168
    %v181 = vmul.f32 %v169, %v169
    %v182 = vmul.f32 %v178, 4.5
    %v183 = vmul.f32 %v179, 4.5
    %v184 = vmul.f32 %v180, 4.5
    %v185 = vmul.f32 %v181, 4.5
    %v186 = vsub.f32 %v170, 0.055555556
    %v187 = vsub.f32 %v171, 0.055555556
    %v188 = vsub.f32 %v172, 0.055555556
    %v189 = vsub.f32 %v173, 0.055555556
    %v190 = vsel %vm174, %v182, %v186
    %v191 = vsel %vm175, %v183, %v187
    %v192 = vsel %vm176, %v184, %v188
    %v193 = vsel %vm177, %v185, %v189
    %vm198 = vcmask 1040384
    %v199 = vrot.slane %v190, 7
    %v200 = vrot.slane %v192, 7
    %v201 = vsel %vm198, %v199, %v200
    %v202 = vrot.slane %v191, 7
    %v203 = vrot.slane %v193, 7
    %v204 = vsel %vm198, %v202, %v203
    %v207 = vsel %vm134, %v201, 0.0
    %v208 = vsel %vm134, %v204, 0.0
    %v209 = vadd.f32 %v207, %v208
    %210 = vadd.xlane.f32.xlu0 %v209
    %v211 = vpop.xlane.xlu0 %210
    %v212 = vrot.slane %v211, 4
    %v213 = vadd.f32 %v211, %v212
    %v214 = vrot.slane %v213, 2
    %v215 = vadd.f32 %v213, %v214
    %v216 = vrot.slane %v215, 1
    %v217 = vadd.f32 %v215, %v216
    %s218 = vtos %v217
    %s219 = sadd.f32 %s147, %s218
    %s220 = sadd.s32 %s60, 2
    %s221 = scalar_lea.smem [#allocation2], %s220
    %222 = sst [smem:[%s221]] %s219
    %v224 = vunpack.c.l.s4 1983009808
    %v225 = vunpack.c.0.s8 %v224
    %v226 = vlaneseq
    %v227 = vshrl.u32 %v226, 7
    %v228 = vsub.s32 %v225, %v227
    %v229 = vrot.slane %v23, %v228
    %v230 = vcombine.high %v229, %v229
    %v233 = vsel %vm47, %v229, 0.0
    %v234 = vsel %vm47, %v230, 0.0
    %v235 = vadd.f32 %v233, %v234
    %236 = vadd.xlane.f32.xlu0 %v235
    %v237 = vpop.xlane.xlu0 %236
    %v238 = vrot.slane %v237, 4
    %v239 = vadd.f32 %v237, %v238
    %v240 = vrot.slane %v239, 2
    %v241 = vadd.f32 %v239, %v240
    %v242 = vrot.slane %v241, 1
    %v243 = vadd.f32 %v241, %v242
    %s244 = vtos %v243
    %s245 = sadd.s32 %s60, 3
    %s246 = scalar_lea.smem [#allocation2], %s245
    %247 = sst [smem:[%s246]] %s244
    %v250 = vunpack.c.l.s4 1983009808
    %v251 = vunpack.c.0.s8 %v250
    %v252 = vlaneseq
    %v253 = vshrl.u32 %v252, 7
    %v254 = vsub.s32 %v251, %v253
    %v255 = vrot.slane %v24, %v254
    %v256 = vcombine.high %v255, %v255
    %v259 = vsel %vm47, %v255, 0.0
    %v260 = vsel %vm47, %v256, 0.0
    %v261 = vadd.f32 %v259, %v260
    %262 = vadd.xlane.f32.xlu0 %v261
    %v263 = vpop.xlane.xlu0 %262
    %v264 = vrot.slane %v263, 4
    %v265 = vadd.f32 %v263, %v264
    %v266 = vrot.slane %v265, 2
    %v267 = vadd.f32 %v265, %v266
    %v268 = vrot.slane %v267, 1
    %v269 = vadd.f32 %v267, %v268
    %s270 = vtos %v269
    %s271 = sadd.s32 %s60, 4
    %s272 = scalar_lea.smem [#allocation2], %s271
    %273 = sst [smem:[%s272]] %s270
    %s274 = sadd.s32 %s21, 1
    %s275 = scalar_lea.vmem %s0, 4
    %v276 = vld [vmem:[%s275] sm:$0xf]
    %s277 = scalar_lea.vmem %s1, 4
    %v278 = vld [vmem:[%s277] sm:$0xf]
    %s279 = scalar_lea.vmem %s2, 4
    %v280 = vld [vmem:[%s279] sm:$0xf]
    %v281 = vsub.f32 0.0, %v278
    %v282 = vadd.f32 %v276, 1e-06
    %v283 = vlog2.pop %v282
    %v284 = vmul.f32 %v283, 0.6931472
    %v285 = vmul.f32 %v281, %v284
    %v286 = vsub.f32 0.0, %v280
    %v287 = vsub.f32 1.0, %v276
    %v288 = vadd.f32 %v287, 1e-06
    %v289 = vlog2.pop %v288
    %v290 = vmul.f32 %v289, 0.6931472
    %v291 = vmul.f32 %v286, %v290
    %v294 = vunpack.c.l.s4 1983009808
    %v295 = vunpack.c.0.s8 %v294
    %v296 = vlaneseq
    %v297 = vshrl.u32 %v296, 7
    %v298 = vsub.s32 %v295, %v297
    %v299 = vrot.slane %v285, %v298
    %v300 = vcombine.high %v299, %v299
    %v303 = vsel %vm47, %v299, 0.0
    %v304 = vsel %vm47, %v300, 0.0
    %v305 = vadd.f32 %v303, %v304
    %306 = vadd.xlane.f32.xlu0 %v305
    %v307 = vpop.xlane.xlu0 %306
    %v308 = vrot.slane %v307, 4
    %v309 = vadd.f32 %v307, %v308
    %v310 = vrot.slane %v309, 2
    %v311 = vadd.f32 %v309, %v310
    %v312 = vrot.slane %v311, 1
    %v313 = vadd.f32 %v311, %v312
    %s314 = vtos %v313
    %s315 = smul.u32 %s274, 128
    %s316 = scalar_lea.smem [#allocation2], %s315
    %317 = sst [smem:[%s316]] %s314
    %v320 = vunpack.c.l.s4 1983009808
    %v321 = vunpack.c.0.s8 %v320
    %v322 = vlaneseq
    %v323 = vshrl.u32 %v322, 7
    %v324 = vsub.s32 %v321, %v323
    %v325 = vrot.slane %v291, %v324
    %v326 = vcombine.high %v325, %v325
    %v329 = vsel %vm47, %v325, 0.0
    %v330 = vsel %vm47, %v326, 0.0
    %v331 = vadd.f32 %v329, %v330
    %332 = vadd.xlane.f32.xlu0 %v331
    %v333 = vpop.xlane.xlu0 %332
    %v334 = vrot.slane %v333, 4
    %v335 = vadd.f32 %v333, %v334
    %v336 = vrot.slane %v335, 2
    %v337 = vadd.f32 %v335, %v336
    %v338 = vrot.slane %v337, 1
    %v339 = vadd.f32 %v337, %v338
    %s340 = vtos %v339
    %s341 = sadd.s32 %s315, 1
    %s342 = scalar_lea.smem [#allocation2], %s341
    %343 = sst [smem:[%s342]] %s340
    %s344 = scalar_lea.vmem %s3, 32
    %v345 = vld [vmem:[%s344] sm:$0xff]
    %v346 = vld [vmem:[%s344 + $0x8] sm:$0xff]
    %v347 = vld [vmem:[%s344 + $0x10] sm:$0x3f]
    %v348 = vld [vmem:[%s344 + $0x18] sm:$0x3f]
    %s349 = scalar_lea.vmem %s4, 32
    %v350 = vld [vmem:[%s349] sm:$0xff]
    %v351 = vld [vmem:[%s349 + $0x8] sm:$0xff]
    %v352 = vld [vmem:[%s349 + $0x10] sm:$0x3f]
    %v353 = vld [vmem:[%s349 + $0x18] sm:$0x3f]
    %v354 = vsub.f32 %v345, %v350
    %v355 = vsub.f32 %v346, %v351
    %v356 = vsub.f32 %v347, %v352
    %v357 = vsub.f32 %v348, %v353
    %v359 = vlaneseq
    %v360 = vshrl.u32 %v359, 7
    %v361 = vsub.s32 0, %v360
    %v362 = vrot.slane %v278, %v361
    %v363 = vlaneseq
    %v364 = vshrl.u32 %v363, 7
    %v365 = vsub.s32 2, %v364
    %v366 = vrot.slane %v278, %v365
    %v369 = vlaneseq
    %v370 = vshrl.u32 %v369, 7
    %v371 = vsub.s32 0, %v370
    %v372 = vrot.slane %v362, %v371
    %v373 = vlaneseq
    %v374 = vshrl.u32 %v373, 7
    %v375 = vsub.s32 0, %v374
    %v376 = vrot.slane %v366, %v375
    %v377 = vmul.f32 %v354, %v372
    %v378 = vmul.f32 %v355, %v376
    %v379 = vand.u32 2147483647, %v377
    %v380 = vand.u32 2147483647, %v378
    %vm381 = vcmp.lt.f32.partialorder %v379, 0.11111111
    %vm382 = vcmp.lt.f32.partialorder %v380, 0.11111111
    %v383 = vmul.f32 %v377, %v377
    %v384 = vmul.f32 %v378, %v378
    %v385 = vmul.f32 %v383, 4.5
    %v386 = vmul.f32 %v384, 4.5
    %v387 = vsub.f32 %v379, 0.055555556
    %v388 = vsub.f32 %v380, 0.055555556
    %v389 = vsel %vm381, %v385, %v387
    %v390 = vsel %vm382, %v386, %v388
    %v391 = vsel %vm134, %v389, 0.0
    %v392 = vsel %vm134, %v390, 0.0
    %v393 = vadd.f32 %v391, %v392
    %394 = vadd.xlane.f32.xlu0 %v393
    %v395 = vpop.xlane.xlu0 %394
    %v396 = vrot.slane %v395, 4
    %v397 = vadd.f32 %v395, %v396
    %v398 = vrot.slane %v397, 2
    %v399 = vadd.f32 %v397, %v398
    %v400 = vrot.slane %v399, 1
    %v401 = vadd.f32 %v399, %v400
    %s402 = vtos %v401
    %s403 = sadd.f32 %s402, 0.0
    %v404 = vlaneseq
    %v405 = vshrl.u32 %v404, 7
    %v406 = vsub.s32 1, %v405
    %v407 = vrot.slane %v278, %v406
    %v408 = vlaneseq
    %v409 = vshrl.u32 %v408, 7
    %v410 = vsub.s32 3, %v409
    %v411 = vrot.slane %v278, %v410
    %v414 = vlaneseq
    %v415 = vshrl.u32 %v414, 7
    %v416 = vsub.s32 1, %v415
    %v417 = vrot.slane %v407, %v416
    %v418 = vlaneseq
    %v419 = vshrl.u32 %v418, 7
    %v420 = vsub.s32 1, %v419
    %v421 = vrot.slane %v411, %v420
    %v422 = vmul.f32 %v354, %v417
    %v423 = vmul.f32 %v355, %v421
    %v424 = vmul.f32 %v356, %v417
    %v425 = vmul.f32 %v357, %v421
    %v426 = vand.u32 2147483647, %v422
    %v427 = vand.u32 2147483647, %v423
    %v428 = vand.u32 2147483647, %v424
    %v429 = vand.u32 2147483647, %v425
    %vm430 = vcmp.lt.f32.partialorder %v426, 0.11111111
    %vm431 = vcmp.lt.f32.partialorder %v427, 0.11111111
    %vm432 = vcmp.lt.f32.partialorder %v428, 0.11111111
    %vm433 = vcmp.lt.f32.partialorder %v429, 0.11111111
    %v434 = vmul.f32 %v422, %v422
    %v435 = vmul.f32 %v423, %v423
    %v436 = vmul.f32 %v424, %v424
    %v437 = vmul.f32 %v425, %v425
    %v438 = vmul.f32 %v434, 4.5
    %v439 = vmul.f32 %v435, 4.5
    %v440 = vmul.f32 %v436, 4.5
    %v441 = vmul.f32 %v437, 4.5
    %v442 = vsub.f32 %v426, 0.055555556
    %v443 = vsub.f32 %v427, 0.055555556
    %v444 = vsub.f32 %v428, 0.055555556
    %v445 = vsub.f32 %v429, 0.055555556
    %v446 = vsel %vm430, %v438, %v442
    %v447 = vsel %vm431, %v439, %v443
    %v448 = vsel %vm432, %v440, %v444
    %v449 = vsel %vm433, %v441, %v445
    %v454 = vrot.slane %v446, 7
    %v455 = vrot.slane %v448, 7
    %v456 = vsel %vm198, %v454, %v455
    %v457 = vrot.slane %v447, 7
    %v458 = vrot.slane %v449, 7
    %v459 = vsel %vm198, %v457, %v458
    %v462 = vsel %vm134, %v456, 0.0
    %v463 = vsel %vm134, %v459, 0.0
    %v464 = vadd.f32 %v462, %v463
    %465 = vadd.xlane.f32.xlu0 %v464
    %v466 = vpop.xlane.xlu0 %465
    %v467 = vrot.slane %v466, 4
    %v468 = vadd.f32 %v466, %v467
    %v469 = vrot.slane %v468, 2
    %v470 = vadd.f32 %v468, %v469
    %v471 = vrot.slane %v470, 1
    %v472 = vadd.f32 %v470, %v471
    %s473 = vtos %v472
    %s474 = sadd.f32 %s403, %s473
    %s475 = sadd.s32 %s315, 2
    %s476 = scalar_lea.smem [#allocation2], %s475
    %477 = sst [smem:[%s476]] %s474
    %v479 = vunpack.c.l.s4 1983009808
    %v480 = vunpack.c.0.s8 %v479
    %v481 = vlaneseq
    %v482 = vshrl.u32 %v481, 7
    %v483 = vsub.s32 %v480, %v482
    %v484 = vrot.slane %v278, %v483
    %v485 = vcombine.high %v484, %v484
    %v488 = vsel %vm47, %v484, 0.0
    %v489 = vsel %vm47, %v485, 0.0
    %v490 = vadd.f32 %v488, %v489
    %491 = vadd.xlane.f32.xlu0 %v490
    %v492 = vpop.xlane.xlu0 %491
    %v493 = vrot.slane %v492, 4
    %v494 = vadd.f32 %v492, %v493
    %v495 = vrot.slane %v494, 2
    %v496 = vadd.f32 %v494, %v495
    %v497 = vrot.slane %v496, 1
    %v498 = vadd.f32 %v496, %v497
    %s499 = vtos %v498
    %s500 = sadd.s32 %s315, 3
    %s501 = scalar_lea.smem [#allocation2], %s500
    %502 = sst [smem:[%s501]] %s499
    %v505 = vunpack.c.l.s4 1983009808
    %v506 = vunpack.c.0.s8 %v505
    %v507 = vlaneseq
    %v508 = vshrl.u32 %v507, 7
    %v509 = vsub.s32 %v506, %v508
    %v510 = vrot.slane %v280, %v509
    %v511 = vcombine.high %v510, %v510
    %v514 = vsel %vm47, %v510, 0.0
    %v515 = vsel %vm47, %v511, 0.0
    %v516 = vadd.f32 %v514, %v515
    %517 = vadd.xlane.f32.xlu0 %v516
    %v518 = vpop.xlane.xlu0 %517
    %v519 = vrot.slane %v518, 4
    %v520 = vadd.f32 %v518, %v519
    %v521 = vrot.slane %v520, 2
    %v522 = vadd.f32 %v520, %v521
    %v523 = vrot.slane %v522, 1
    %v524 = vadd.f32 %v522, %v523
    %s525 = vtos %v524
    %s526 = sadd.s32 %s315, 4
    %s527 = scalar_lea.smem [#allocation2], %s526
    %528 = sst [smem:[%s527]] %s525
    // Predicated region
    $region22: #{tpu_custom_call.1} parent=1 // pred_check
      _
    $region23: #{tpu_custom_call.1} parent=1 // pred_check_branch
      %530 = sbr.rel (0) target = $region25
    $region24: #{tpu_custom_call.1} parent=1 // pred_region
      %s532 = ssub.s32 32, 32
      %533 = vsyncadd [#allocation3], %s532
      %536 = dma.smem_to_hbm [#allocation2], 32, %s5, [#allocation3]
    $region25: #{tpu_custom_call.1} parent=1 // pred_fallthru
      _
    // Predicated region
    $region26: #{tpu_custom_call.1} parent=1 // pred_check
      _
    $region27: #{tpu_custom_call.1} parent=1 // pred_check_branch
      %538 = sbr.rel (0) target = $region29
    $region28: #{tpu_custom_call.1} parent=1 // pred_region
      %539 = dma.done [#allocation3], 32
    $region29: #{tpu_custom_call.1} parent=1 // pred_fallthru
      _
    %540 = sfence
    %541 = vsyncpa [#allocation3], 1

</llo_original>
